<compile_context>
chip_gen: v7x
topology: tpu7x:2x2x1
jax: 0.10.0
libtpu: 0.0.40
codegen_flags: <defaults>
</compile_context>

<pallas_src>
import functools

import jax
import jax.numpy as jnp
from jax import lax
from jax.experimental import pallas as pl
from jax.experimental.pallas import tpu as pltpu


_MASK_VAL = -1e30                      # finite "-inf": avoids inf-inf NaNs in online LSE
_WORK_CAP = 40 * 1024 * 1024           # per-step VMEM working-set target (v7x-safe)
_AUX_RESIDENT_CAP = 24 * 1024 * 1024   # max bytes for a fully VMEM-resident aux matrix
_VMEM_LIMIT = 56 * 1024 * 1024         # scoped VMEM limit (< v7x 64 MiB physical)


# --------------------------------------------------------------------------- #
# Kernels
# --------------------------------------------------------------------------- #
def _resident_kernel(s_ref, a_ref, o_ref, *, inv_temp, n_valid, n_pad, block):
    """1-D grid over row blocks; auxiliary_repr fully VMEM-resident."""
    qi = pl.program_id(0)
    f32 = jnp.float32

    # Temperature folded into the LHS tile once per row block (O(block*D) mults).
    s_scaled = s_ref[...].astype(f32) * inv_temp                     # (block, D) f32
    if s_ref.dtype == f32:
        s_mm = s_scaled
    else:
        s_mm = s_scaled.astype(s_ref.dtype)                          # e.g. bf16 for MXU

    n_steps = n_pad // block
    need_mask = n_valid < n_pad

    def step(c, carry):
        m_prev, l_prev = carry
        start = c * block
        if not isinstance(start, int):
            start = pl.multiple_of(start, block)
        if n_pad == block:
            a_blk = a_ref[...]
        else:
            a_blk = a_ref[pl.ds(start, block), :]                    # (block, D)
        logits = lax.dot_general(                                    # (block, block) f32
            s_mm, a_blk, dimension_numbers=(((1,), (1,)), ((), ())),
            preferred_element_type=f32)
        if need_mask:
            col = start + lax.broadcasted_iota(jnp.int32, logits.shape, 1)
            logits = jnp.where(col < n_valid, logits, _MASK_VAL)
        # Online (flash-style) log-sum-exp; stats stay (block, 1) f32.
        m_new = jnp.maximum(m_prev, jnp.max(logits, axis=-1, keepdims=True))
        p = jnp.exp(logits - m_new)
        l_new = jnp.exp(m_prev - m_new) * l_prev + jnp.sum(p, axis=-1, keepdims=True)
        return m_new, l_new

    m0 = jnp.full((block, 1), _MASK_VAL, f32)
    l0 = jnp.zeros((block, 1), f32)
    if n_steps <= 8:
        m, l = m0, l0
        for c in range(n_steps):                                     # fully unrolled
            m, l = step(c, (m, l))
    else:
        m, l = lax.fori_loop(0, n_steps, step, (m0, l0))

    # Diagonal logits[i, i] straight from the inputs, using the SAME scaled/cast
    # operands as the matmul (keeps bf16 path consistent).
    if n_pad == block:
        a_diag = a_ref[...]
    else:
        r0 = pl.multiple_of(qi * block, block)
        a_diag = a_ref[pl.ds(r0, block), :]
    diag = jnp.sum(s_mm.astype(f32) * a_diag.astype(f32), axis=-1, keepdims=True)

    o_ref[...] = m + jnp.log(l) - diag


def _tiled_kernel(s_ref, a_ref, o_ref, s_cache, m_sc, l_sc, d_sc, *,
                  inv_temp, n_valid, n_pad, block):
    """2-D grid fallback (aux too large for VMEM residency)."""
    qi = pl.program_id(0)          # row block
    ki = pl.program_id(1)          # column block (reduction axis, swept 0..last)
    f32 = jnp.float32

    @pl.when(ki == 0)
    def _init():
        m_sc[...] = jnp.full_like(m_sc, _MASK_VAL)
        l_sc[...] = jnp.zeros_like(l_sc)
        # Hoisted: rescale (+ optional cast) of the resident LHS tile happens once
        # per row block instead of once per ki step.
        s_cache[...] = (s_ref[...].astype(f32) * inv_temp).astype(s_cache.dtype)

    s_mm = s_cache[...]
    a_mm = a_ref[...]
    logits = lax.dot_general(
        s_mm, a_mm, dimension_numbers=(((1,), (1,)), ((), ())),
        preferred_element_type=f32)                                  # (block, block)
    if n_valid < n_pad:
        col = ki * block + lax.broadcasted_iota(jnp.int32, logits.shape, 1)
        logits = jnp.where(col < n_valid, logits, _MASK_VAL)

    m_prev = m_sc[...]
    m_new = jnp.maximum(m_prev, jnp.max(logits, axis=-1, keepdims=True))
    p = jnp.exp(logits - m_new)
    l_sc[...] = jnp.exp(m_prev - m_new) * l_sc[...] + jnp.sum(p, axis=-1, keepdims=True)
    m_sc[...] = m_new

    # Diagonal from the inputs on the column block aligned with this row block.
    # NOTE: relies on ki being swept sequentially 0..last ("arbitrary") for each qi,
    # so this fires before the finalize below.  Do not reorder/parallelize ki.
    @pl.when(ki == qi)
    def _diag():
        d_sc[...] = jnp.sum(s_mm.astype(f32) * a_mm.astype(f32), axis=-1, keepdims=True)

    @pl.when(ki == pl.num_programs(1) - 1)
    def _finalize():
        o_ref[...] = m_sc[...] + jnp.log(l_sc[...]) - d_sc[...]


# --------------------------------------------------------------------------- #
# Block planning (VMEM-aware, generation-safe)
# --------------------------------------------------------------------------- #
def _round_up(x, m):
    return ((x + m - 1) // m) * m


def _pow2_blocks(max_block):
    out = []
    b = 1
    while b * 2 <= max_block:
        b *= 2
    while b >= 8:
        out.append(b)
        b //= 2
    return out


def _plan_resident(n, d, isz, max_block):
    """Pick (block, n_pad) for the resident-aux path, or None if aux can't fit."""
    cands = ([n] if n <= max_block else []) + _pow2_blocks(max_block)
    for block in cands:
        n_pad = n if block == n else _round_up(n, block)
        aux_bytes = 2 * n_pad * d * isz                  # aux (budget 2 pipeline bufs)
        est = (aux_bytes
               + 2 * block * d * isz                     # double-buffered shared tiles
               + block * d * 4                           # scaled f32 LHS copy
               + 2 * block * block * 4                   # logits + p intermediates
               + (1 << 20))                              # slack
        if aux_bytes <= _AUX_RESIDENT_CAP and est <= _WORK_CAP:
            return block, n_pad
    return None


def _plan_tiled(n, d, isz, max_block):
    cands = _pow2_blocks(max_block) or [8]
    for block in cands:
        est = (4 * block * d * isz                       # 2 inputs x 2 buffers
               + block * d * 4                           # s_cache scratch
               + 2 * block * block * 4                   # logits + p
               + (1 << 20))
        if est <= _WORK_CAP:
            return block, _round_up(n, block)
    block = cands[-1]
    return block, _round_up(n, block)


# --------------------------------------------------------------------------- #
# Wrapper
# --------------------------------------------------------------------------- #
def intra_image_contrastive_loss(shared_repr, auxiliary_repr, temperature=0.1, *,
                                 max_block=1024, compute_dtype=None,
                                 force_tiled=False):
    """JAX/Pallas equivalent of IntraImageContrastiveLoss.forward. Returns a scalar."""
    n, d = shared_repr.shape
    assert auxiliary_repr.shape == (n, d)
    inv_temp = float(1.0 / temperature)

    # Cast MXU operands once, outside the kernel (halves streamed bytes; native MXU
    # rate on v6e/v7x).  Softmax / LSE math stays f32 inside the kernel.
    if compute_dtype is not None and shared_repr.dtype != compute_dtype:
        shared_repr = shared_repr.astype(compute_dtype)
        auxiliary_repr = auxiliary_repr.astype(compute_dtype)
    isz = jnp.dtype(shared_repr.dtype).itemsize

    plan = None if force_tiled else _plan_resident(n, d, isz, max_block)
    if plan is not None:
        block, n_pad = plan
        tiled = False
    else:
        block, n_pad = _plan_tiled(n, d, isz, max_block)
        tiled = True

    if n_pad != n:  # pad to a block multiple; padded cols are masked, rows excluded
        pad = n_pad - n
        shared_repr = jnp.pad(shared_repr, ((0, pad), (0, 0)))
        auxiliary_repr = jnp.pad(auxiliary_repr, ((0, pad), (0, 0)))

    n_blocks = n_pad // block
    out_shape = jax.ShapeDtypeStruct((n_pad, 1), jnp.float32)

    if not tiled:
        kernel = functools.partial(_resident_kernel, inv_temp=inv_temp,
                                   n_valid=n, n_pad=n_pad, block=block)
        per_row = pl.pallas_call(
            kernel,
            out_shape=out_shape,
            grid_spec=pltpu.PrefetchScalarGridSpec(
                num_scalar_prefetch=0,
                grid=(n_blocks,),
                in_specs=[
                    pl.BlockSpec((block, d), lambda qi: (qi, 0)),   # shared row block
                    pl.BlockSpec((n_pad, d), lambda qi: (0, 0)),    # aux: VMEM-resident
                ],
                out_specs=pl.BlockSpec((block, 1), lambda qi: (qi, 0)),
            ),
            compiler_params=pltpu.CompilerParams(
                dimension_semantics=("parallel",),
                vmem_limit_bytes=_VMEM_LIMIT),
        )(shared_repr, auxiliary_repr)
    else:
        kernel = functools.partial(_tiled_kernel, inv_temp=inv_temp,
                                   n_valid=n, n_pad=n_pad, block=block)
        per_row = pl.pallas_call(
            kernel,
            out_shape=out_shape,
            grid_spec=pltpu.PrefetchScalarGridSpec(
                num_scalar_prefetch=0,
                grid=(n_blocks, n_blocks),
                in_specs=[
                    pl.BlockSpec((block, d), lambda qi, ki: (qi, 0)),
                    pl.BlockSpec((block, d), lambda qi, ki: (ki, 0)),
                ],
                out_specs=pl.BlockSpec((block, 1), lambda qi, ki: (qi, 0)),
                scratch_shapes=[
                    pltpu.VMEM((block, d), shared_repr.dtype),   # cached scaled LHS
                    pltpu.VMEM((block, 1), jnp.float32),         # running row max
                    pltpu.VMEM((block, 1), jnp.float32),         # running row sum
                    pltpu.VMEM((block, 1), jnp.float32),         # diagonal logits
                ],
            ),
            compiler_params=pltpu.CompilerParams(
                dimension_semantics=("parallel", "arbitrary"),
                vmem_limit_bytes=_VMEM_LIMIT),
        )(shared_repr, auxiliary_repr)

    # Tiny final reduction over the N valid per-row losses (padded rows excluded).
    return jnp.mean(per_row[:n, 0])


def _reference_loss(shared_repr, auxiliary_repr, temperature=0.1):
    logits = (shared_repr @ auxiliary_repr.T) / temperature
    lse = jax.scipy.special.logsumexp(logits, axis=-1)
    diag = jnp.diagonal(logits)
    return jnp.mean(lse - diag)


if __name__ == "__main__":
    key = jax.random.PRNGKey(0)
    k = jax.random.split(key, 8)

    # 1) Typical small intra-image case: resident path, single row block, no padding.
    N, D = 8, 32
    s1 = jax.random.normal(k[0], (N, D), dtype=jnp.float32)
    a1 = jax.random.normal(k[1], (N, D), dtype=jnp.float32)
    out1 = jax.block_until_ready(intra_image_contrastive_loss(s1, a1, temperature=0.1))
    ref1 = _reference_loss(s1, a1, temperature=0.1)
    assert jnp.allclose(out1, ref1, atol=1e-4, rtol=1e-4), (out1, ref1)

    # 2) Resident path, multiple row blocks, padding + column masking, fori column loop.
    N2, D2 = 77, 32
    s2 = jax.random.normal(k[2], (N2, D2), dtype=jnp.float32)
    a2 = jax.random.normal(k[3], (N2, D2), dtype=jnp.float32)
    out2 = jax.block_until_ready(
        intra_image_contrastive_loss(s2, a2, temperature=0.1, max_block=8))
    ref2 = _reference_loss(s2, a2, temperature=0.1)
    assert jnp.allclose(out2, ref2, atol=1e-4, rtol=1e-4), (out2, ref2)

    # 3) Tiled 2-D-grid fallback path (forced), padding + masking + cached LHS scratch.
    N3, D3 = 40, 32
    s3 = jax.random.normal(k[4], (N3, D3), dtype=jnp.float32)
    a3 = jax.random.normal(k[5], (N3, D3), dtype=jnp.float32)
    out3 = jax.block_until_ready(
        intra_image_contrastive_loss(s3, a3, temperature=0.1, max_block=16,
                                     force_tiled=True))
    ref3 = _reference_loss(s3, a3, temperature=0.1)
    assert jnp.allclose(out3, ref3, atol=1e-4, rtol=1e-4), (out3, ref3)

    # 4) bf16 MXU operands (cast once in the wrapper), f32 LSE stats (loose tolerance
    #    vs. the f32 reference).
    N4, D4 = 128, 64
    s4 = jax.random.normal(k[6], (N4, D4), dtype=jnp.float32)
    a4 = jax.random.normal(k[7], (N4, D4), dtype=jnp.float32)
    out4 = jax.block_until_ready(
        intra_image_contrastive_loss(s4, a4, temperature=0.1,
                                     compute_dtype=jnp.bfloat16))
    ref4 = _reference_loss(s4, a4, temperature=0.1)
    assert jnp.allclose(out4, ref4, atol=0.5, rtol=5e-2), (out4, ref4)

    print("KERNEL_OK")
</pallas_src>

<mosaic_0001>
module attributes {stable_mosaic.version = 11 : i64} {
  func.func @_resident_kernel(%arg0: i32, %arg1: memref<8x32xf32, #tpu.memory_space<vmem>>, %arg2: memref<8x32xf32, #tpu.memory_space<vmem>>, %arg3: memref<8x1xf32, #tpu.memory_space<vmem>>) attributes {dimension_semantics = [#tpu.dimension_semantics<parallel>], iteration_bounds = array<i64: 1>, scalar_prefetch = 0 : i64, scratch_operands = 0 : i64, tpu.core_type = #tpu.core_type<tc>, window_params = [{transform_indices = @transform_0, window_bounds = array<i64: 8, 32>}, {pipeline_mode = #tpu.pipeline_mode<synchronous>, transform_indices = @transform_1, window_bounds = array<i64: 8, 32>}, {transform_indices = @transform_2, window_bounds = array<i64: 8, 1>}]} {
    %c0 = arith.constant 0 : index
    %c0_0 = arith.constant 0 : index
    %0 = vector.load %arg1[%c0, %c0_0] : memref<8x32xf32, #tpu.memory_space<vmem>>, vector<8x32xf32>
    %cst = arith.constant 1.000000e+01 : f32
    %1 = vector.broadcast %cst : f32 to vector<8x32xf32>
    %2 = arith.mulf %0, %1 : vector<8x32xf32>
    %cst_1 = arith.constant -1.000000e+30 : f32
    %3 = vector.broadcast %cst_1 : f32 to vector<8x1xf32>
    %cst_2 = arith.constant 0.000000e+00 : f32
    %4 = vector.broadcast %cst_2 : f32 to vector<8x1xf32>
    %c0_3 = arith.constant 0 : index
    %c0_4 = arith.constant 0 : index
    %5 = vector.load %arg2[%c0_3, %c0_4] : memref<8x32xf32, #tpu.memory_space<vmem>>, vector<8x32xf32>
    %cst_5 = arith.constant dense<0.000000e+00> : vector<8x8xf32>
    %6 = tpu.matmul %2, %5, %cst_5 {dimension_numbers = #tpu.dot_dimension_numbers<[1], [1], [0], [0], [0, 0, 1, 0], [], []>} : vector<8x32xf32>, vector<8x32xf32>, vector<8x8xf32> -> vector<8x8xf32>
    %cst_6 = arith.constant dense<0xFF800000> : vector<8xf32>
    %7 = vector.multi_reduction <maximumf>, %6, %cst_6 [1] : vector<8x8xf32> to vector<8xf32>
    %8 = vector.shape_cast %7 : vector<8xf32> to vector<8x1xf32>
    %9 = arith.maximumf %3, %8 : vector<8x1xf32>
    %10 = vector.broadcast %9 : vector<8x1xf32> to vector<8x8xf32>
    %11 = arith.subf %6, %10 : vector<8x8xf32>
    %12 = math.exp %11 : vector<8x8xf32>
    %13 = arith.subf %3, %9 : vector<8x1xf32>
    %14 = math.exp %13 : vector<8x1xf32>
    %15 = arith.mulf %14, %4 : vector<8x1xf32>
    %cst_7 = arith.constant dense<0.000000e+00> : vector<8xf32>
    %16 = vector.multi_reduction <add>, %12, %cst_7 [1] : vector<8x8xf32> to vector<8xf32>
    %17 = vector.shape_cast %16 : vector<8xf32> to vector<8x1xf32>
    %18 = arith.addf %15, %17 : vector<8x1xf32>
    %c0_8 = arith.constant 0 : index
    %c0_9 = arith.constant 0 : index
    %19 = vector.load %arg2[%c0_8, %c0_9] : memref<8x32xf32, #tpu.memory_space<vmem>>, vector<8x32xf32>
    %20 = arith.mulf %2, %19 : vector<8x32xf32>
    %cst_10 = arith.constant dense<0.000000e+00> : vector<8xf32>
    %21 = vector.multi_reduction <add>, %20, %cst_10 [1] : vector<8x32xf32> to vector<8xf32>
    %22 = vector.shape_cast %21 : vector<8xf32> to vector<8x1xf32>
    %23 = math.log %18 : vector<8x1xf32>
    %24 = arith.addf %9, %23 : vector<8x1xf32>
    %25 = arith.subf %24, %22 : vector<8x1xf32>
    %c0_11 = arith.constant 0 : index
    %c0_12 = arith.constant 0 : index
    %26 = vector.load %arg3[%c0_11, %c0_12] : memref<8x1xf32, #tpu.memory_space<vmem>>, vector<8x1xf32>
    tpu.vector_store %arg3[%c0_11, %c0_12], %25 {strides = array<i32>} : memref<8x1xf32, #tpu.memory_space<vmem>>, vector<8x1xf32>,
    return
  }
  func.func @transform_0(%arg0: i32) -> (i32, i32) {
    %c0_i32 = arith.constant 0 : i32
    %c0_i32_0 = arith.constant 0 : i32
    return %arg0, %c0_i32 : i32, i32
  }
  func.func @transform_1(%arg0: i32) -> (i32, i32) {
    %c0_i32 = arith.constant 0 : i32
    %c0_i32_0 = arith.constant 0 : i32
    %c0_i32_1 = arith.constant 0 : i32
    return %c0_i32, %c0_i32_0 : i32, i32
  }
  func.func @transform_2(%arg0: i32) -> (i32, i32) {
    %c0_i32 = arith.constant 0 : i32
    %c0_i32_0 = arith.constant 0 : i32
    return %arg0, %c0_i32 : i32, i32
  }
}

</mosaic_0001>

<llo_original>
// kernel: tpu_custom_call.1
$region0: #{tpu_custom_call.1}
  #allocation0 [shape = 'u32[]', space=smem, size = 0x4, offset = 0x4, fixed_abs, tag = 'smem constant byte address 0x4 - core index']
  #allocation1 [shape = 'u32[144,128]{1,0:T(1,128)}', space=vmem, size = 0x12000, scoped, tag = 'internal scratch']
  %s0 = inlined_call_operand.hbm [shape: f32[8,32], index: 0, kind: input, shape index: {}]
  %s1 = inlined_call_operand.hbm [shape: f32[8,32], index: 1, kind: input, shape index: {}]
  %s2 = inlined_call_operand.vmem [shape: f32[8,1], index: 2, kind: output, shape index: {}]
  %s3 = sld [smem:[#allocation0]]
  $region26: #{tpu_custom_call.1} parent=0
    _
  %s5 = ssub.s32 1, %s3
  %s6 = scalar_select 0, %s5, %s3
  $region1: #{tpu_custom_call.1} parent=0
    #allocation2 [shape = 'u8[4096]{0}', space=vmem, size = 0x1000, scoped, tag = 'input window, operand 0, single buffered']
    #allocation3 [shape = 's32[1]{0}', space=sflag, size = 0x4, scoped, tag = 'scoped memory for tpu_custom_call.1']
    #allocation4 [shape = 'u8[4096]{0}', space=vmem, size = 0x1000, scoped, tag = 'input window, operand 1, single buffered']
    #allocation5 [shape = 's32[1]{0}', space=sflag, size = 0x4, scoped, tag = 'scoped memory for tpu_custom_call.1']
    %7 = vsyncpa [#allocation3], 0
    %8 = vsyncpa [#allocation5], 0
    // Predicated region
    $region2: #{tpu_custom_call.1} parent=1 // pred_check
      _
    $region3: #{tpu_custom_call.1} parent=1 // pred_check_branch
      %10 = sbr.rel (0) target = $region5
    $region4: #{tpu_custom_call.1} parent=1 // pred_region
      %s12 = ssub.s32 128, 128
      %13 = vsyncadd [#allocation3], %s12
      %s15 = sshll.u32 [#allocation2], 4
      %s16 = int_to_ptr.vmem [resolvable:$true] %s15
      %18 = dma.hbm_to_vmem [thread:$0]  %s0, 128, %s16, [#allocation3]
    $region5: #{tpu_custom_call.1} parent=1 // pred_fallthru
      _
    // Predicated region
    $region6: #{tpu_custom_call.1} parent=1 // pred_check
      _
    $region7: #{tpu_custom_call.1} parent=1 // pred_check_branch
      %20 = sbr.rel (0) target = $region9
    $region8: #{tpu_custom_call.1} parent=1 // pred_region
      %s22 = ssub.s32 128, 128
      %23 = vsyncadd [#allocation5], %s22
      %s25 = sshll.u32 [#allocation4], 4
      %s26 = int_to_ptr.vmem [resolvable:$true] %s25
      %28 = dma.hbm_to_vmem [thread:$0]  %s1, 128, %s26, [#allocation5]
    $region9: #{tpu_custom_call.1} parent=1 // pred_fallthru
      _
    // Predicated region
    $region10: #{tpu_custom_call.1} parent=1 // pred_check
      _
    $region11: #{tpu_custom_call.1} parent=1 // pred_check_branch
      %30 = sbr.rel (0) target = $region13
    $region12: #{tpu_custom_call.1} parent=1 // pred_region
      %31 = dma.done [#allocation3], 128
    $region13: #{tpu_custom_call.1} parent=1 // pred_fallthru
      _
    // Predicated region
    $region14: #{tpu_custom_call.1} parent=1 // pred_check
      _
    $region15: #{tpu_custom_call.1} parent=1 // pred_check_branch
      %33 = sbr.rel (0) target = $region17
    $region16: #{tpu_custom_call.1} parent=1 // pred_region
      %34 = dma.done [#allocation5], 128
    $region17: #{tpu_custom_call.1} parent=1 // pred_fallthru
      _
    %v35 = vld [vmem:[#allocation2] sm:$0xff]
    %v36 = vmul.f32 %v35, 10.0
    %v37 = vld [vmem:[#allocation4] sm:$0xff]
    %vm38 = vcmask 261120
    %v40 = vsel %vm38, %v36, 0
    %v43 = vsel %vm38, %v37, 0
    %45 = vmatprep.subr.mxu0 0.0
    %46 = vmatpush1.xpose.msra.mxu0 %v43
    %47 = vmatprep.subr.mxu0 0.0
    %48 = vmatpush1.xpose.msra.mxu0 0.0
    %49 = vmatprep.subr.mxu0 0.0
    %50 = vmatpush1.xpose.msra.mxu0 0.0
    %51 = vmatprep.subr.mxu0 0.0
    %52 = vmatpush1.xpose.msra.mxu0 0.0
    %53 = vmatprep.subr.mxu0 0.0
    %54 = vmatpush1.xpose.msra.mxu0 0.0
    %55 = vmatprep.subr.mxu0 0.0
    %56 = vmatpush1.xpose.msra.mxu0 0.0
    %57 = vmatprep.subr.mxu0 0.0
    %58 = vmatpush1.xpose.msra.mxu0 0.0
    %59 = vmatprep.subr.mxu0 0.0
    %60 = vmatpush1.xpose.msra.mxu0 0.0
    %61 = vmatprep.subr.mxu0 0.0
    %62 = vmatpush1.xpose.msra.mxu0 0.0
    %63 = vmatprep.subr.mxu0 0.0
    %64 = vmatpush1.xpose.msra.mxu0 0.0
    %65 = vmatprep.subr.mxu0 0.0
    %66 = vmatpush1.xpose.msra.mxu0 0.0
    %67 = vmatprep.subr.mxu0 0.0
    %68 = vmatpush1.xpose.msra.mxu0 0.0
    %69 = vmatprep.subr.mxu0 0.0
    %70 = vmatpush1.xpose.msra.mxu0 0.0
    %71 = vmatprep.subr.mxu0 0.0
    %72 = vmatpush1.xpose.msra.mxu0 0.0
    %73 = vmatprep.subr.mxu0 0.0
    %74 = vmatpush1.xpose.msra.mxu0 0.0
    %75 = vmatprep.subr.mxu0 0.0
    %76 = vmatpush1.xpose.msra.mxu0 0.0
    %77 = vmatprep.subr.mxu0 0.0
    %78 = vmatpush1.xpose.msra.mxu0 0.0
    %79 = vmatprep.subr.mxu0 0.0
    %80 = vmatpush1.xpose.msra.mxu0 0.0
    %81 = vmatprep.subr.mxu0 0.0
    %82 = vmatpush1.xpose.msra.mxu0 0.0
    %83 = vmatprep.subr.mxu0 0.0
    %84 = vmatpush1.xpose.msra.mxu0 0.0
    %85 = vmatprep.subr.mxu0 0.0
    %86 = vmatpush1.xpose.msra.mxu0 0.0
    %87 = vmatprep.subr.mxu0 0.0
    %88 = vmatpush1.xpose.msra.mxu0 0.0
    %89 = vmatprep.subr.mxu0 0.0
    %90 = vmatpush1.xpose.msra.mxu0 0.0
    %91 = vmatprep.subr.mxu0 0.0
    %92 = vmatpush1.xpose.msra.mxu0 0.0
    %93 = vmatprep.subr.mxu0 0.0
    %94 = vmatpush1.xpose.msra.mxu0 0.0
    %95 = vmatprep.subr.mxu0 0.0
    %96 = vmatpush1.xpose.msra.mxu0 0.0
    %97 = vmatprep.subr.mxu0 0.0
    %98 = vmatpush1.xpose.msra.mxu0 0.0
    %99 = vmatprep.subr.mxu0 0.0
    %100 = vmatpush1.xpose.msra.mxu0 0.0
    %101 = vmatprep.subr.mxu0 0.0
    %102 = vmatpush1.xpose.msra.mxu0 0.0
    %103 = vmatprep.subr.mxu0 0.0
    %104 = vmatpush1.xpose.msra.mxu0 0.0
    %105 = vmatprep.subr.mxu0 0.0
    %106 = vmatpush1.xpose.msra.mxu0 0.0
    %107 = vmatprep.subr.mxu0 0.0
    %108 = vmatpush1.xpose.msra.mxu0 0.0
    %109 = vmatprep.mubr.f32.mxu0 0.0
    %110 = vmatmul.mubr.f32.gmra.mrb[0].mxu0 %v40
    %v111 = vpop.f32.mrb[0].mxu0
    %v112 = vadd.f32 0.0, %v111
    %v113 = vpop.f32.mrb[0].mxu0
    %114 = vdwg.mxu0
    %vm115 = vcmask 64512
    %v116 = vsel %vm115, %v112, -inf
    %117 = vmax.xlane.f32.xlu0 %v116
    %v118 = vpop.xlane.xlu0 %117
    %v119 = vmax.f32 %v118, -1e+30
    %v120 = vsub.f32 %v112, %v119
    %v121 = vmul.f32 %v120, 1.442695
    %v122 = vpow.pop %v121
    %v123 = vsub.f32 -1e+30, %v119
    %v124 = vmul.f32 %v123, 1.442695
    %v125 = vpow.pop %v124
    %v126 = vmul.f32 %v125, 0.0
    %v127 = vsel %vm115, %v122, 0.0
    %128 = vadd.xlane.f32.xlu0 %v127
    %v129 = vpop.xlane.xlu0 %128
    %v130 = vadd.f32 %v126, %v129
    %v131 = vmul.f32 %v36, %v37
    %v132 = vsel %vm38, %v131, 0.0
    %133 = vadd.xlane.f32.xlu0 %v132
    %v134 = vpop.xlane.xlu0 %133
    %v135 = vlog2.pop %v130
    %v136 = vmul.f32 %v135, 0.6931472
    %v137 = vadd.f32 %v119, %v136
    %v138 = vsub.f32 %v137, %v134
    %vm139 = vcmask 7168
    %140 = vst.msk [vmem:[%s2] sm:$0xff] %vm139, %v138
    // Predicated region
    $region18: #{tpu_custom_call.1} parent=1 // pred_check
      _
    $region19: #{tpu_custom_call.1} parent=1 // pred_check_branch
      %142 = sbr.rel (0) target = $region21
    $region20: #{tpu_custom_call.1} parent=1 // pred_region
      _
    $region21: #{tpu_custom_call.1} parent=1 // pred_fallthru
      _
    // Predicated region
    $region22: #{tpu_custom_call.1} parent=1 // pred_check
      _
    $region23: #{tpu_custom_call.1} parent=1 // pred_check_branch
      %144 = sbr.rel (0) target = $region25
    $region24: #{tpu_custom_call.1} parent=1 // pred_region
      _
    $region25: #{tpu_custom_call.1} parent=1 // pred_fallthru
      _
    %145 = vsyncpa [#allocation3], 1
    %146 = vsyncpa [#allocation5], 1

</llo_original>
